<compile_context>
chip_gen: v6e
topology: v6e:2x2x1
jax: 0.10.0
libtpu: 0.0.40
codegen_flags: <defaults>
</compile_context>

<pallas_src>
import functools

import numpy as np
import jax
import jax.numpy as jnp
from jax.experimental import pallas as pl
from jax.experimental.pallas import tpu as pltpu


# ---------------------------------------------------------------------------
# activations (usable both in-kernel and in the pure-JAX reference)
# ---------------------------------------------------------------------------
def _activate(y, activ):
    if activ == "relu":
        return jnp.maximum(y, 0.0)
    if activ == "gelu":
        return jax.nn.gelu(y, approximate=False)   # PyTorch nn.GELU default (erf)
    if activ == "swish":
        return y * jax.nn.sigmoid(y)               # SiLU
    if activ == "leaky_relu":
        return jnp.where(y >= 0.0, y, 0.01 * y)    # PyTorch default slope
    raise ValueError(f"unknown activation {activ}")


# ---------------------------------------------------------------------------
# one-time probe: pin down pltpu.roll's direction convention (vs np.roll) so the
# shift helper below is correct regardless of the exact rotate semantics.
# Must be called outside of jit (the script never jits the wrapper).
# ---------------------------------------------------------------------------
@functools.lru_cache(maxsize=None)
def _roll_is_numpy_semantics():
    def k(x_ref, o_ref):
        o_ref[...] = pltpu.roll(x_ref[...], 1, axis=1)

    x = jnp.tile(jnp.arange(128, dtype=jnp.float32)[None, :], (8, 1))
    r = pl.pallas_call(k, out_shape=jax.ShapeDtypeStruct((8, 128), jnp.float32))(x)
    first = float(r[0, 0])
    if first == 127.0:       # np.roll: result[i] = x[i - shift]
        return True
    if first == 1.0:         # opposite convention: result[i] = x[i + shift]
        return False
    raise RuntimeError("unexpected pltpu.roll semantics")


# ---------------------------------------------------------------------------
# fused Pallas kernel: all ConvUnits + global average pool for B samples
# ---------------------------------------------------------------------------
def fused_encoder_kernel(x_ref, imap_ref, jmap_ref, *refs,
                         num_layers, pool, activ, H0, W0, compute_dtype, roll_np):
    """Whole ConvEncoder forward for one batch block of B samples.

    x_ref    : (Cin, B*H0*W0)   input, (sample, row, col) flattened on lanes
    imap_ref : (1,   B*H0*W0)   row index of each lane position (int32)
    jmap_ref : (1,   B*H0*W0)   col index of each lane position (int32)
    per layer l (2 refs each):
      wt_ref : (Cout_l, 9*Cin_l)  conv weights, taps packed in K, BN scale folded
      bt_ref : (Cout_l, 1)        folded conv-bias + BN shift (f32)
    o_ref    : (1, C_last, B)     encoder features for this batch block
    """
    o_ref = refs[2 * num_layers]
    imap = imap_ref[...]                        # (1, lanes) int32
    jmap = jmap_ref[...]
    lanes = x_ref.shape[1]
    s0 = H0 * W0
    b = lanes // s0

    def shift(v, off):
        # result[p] = v[(p + off) % lanes]; callers mask any wrapped reads.
        n = v.shape[-1]
        s = (-off) % n if roll_np else off % n
        if s == 0:
            return v
        return pltpu.roll(v, s, axis=v.ndim - 1)

    act = x_ref[...]                            # (Cin, lanes), f32 elementwise domain
    for l in range(num_layers):
        wt_ref, bt_ref = refs[2 * l], refs[2 * l + 1]
        d = 1 << l                              # dilation of this layer's valid grid
        a = act.astype(compute_dtype)           # bf16 MXU operands (f32 acc below)

        # 3x3 taps via lane rolls + padding masks (XLU/VPU slots, no gather matmul).
        slabs = []
        for kh in (-1, 0, 1):
            for kw in (-1, 0, 1):
                sh = shift(a, (kh * W0 + kw) * d)
                conds = []
                if kh < 0:
                    conds.append(imap >= d)
                if kh > 0:
                    conds.append(imap < H0 - d)
                if kw < 0:
                    conds.append(jmap >= d)
                if kw > 0:
                    conds.append(jmap < W0 - d)
                if conds:
                    m = conds[0]
                    for extra in conds[1:]:
                        m = jnp.logical_and(m, extra)
                    sh = jnp.where(m, sh, jnp.zeros_like(sh))
                slabs.append(sh)
        operand = jnp.concatenate(slabs, axis=0)            # (9*Cin, lanes)

        # one MXU matmul per layer: conv (+ folded BN scale), f32 accumulation.
        y = jnp.dot(wt_ref[...], operand,
                    preferred_element_type=jnp.float32)     # (Cout, lanes), f32
        y = _activate(y + bt_ref[...], activ)                # f32 elementwise tail

        # 2x2 / stride-2 pool on the dilation-d grid == elementwise op of rolled slabs.
        if pool == "max":
            t = jnp.maximum(y, shift(y, d))
            act = jnp.maximum(t, shift(t, d * W0))
        else:  # avg
            t = y + shift(y, d)
            act = (t + shift(t, d * W0)) * 0.25

    # AdaptiveAvgPool2d((1,1)) + flatten == mean over the valid (stride-2^L) grid.
    df = 1 << num_layers
    valid = jnp.logical_and((imap & (df - 1)) == 0, (jmap & (df - 1)) == 0)
    act = jnp.where(valid, act, 0.0)
    cols = []
    for n in range(b):                                       # lane-aligned 256-wide slices
        cols.append(jnp.sum(act[:, n * s0:(n + 1) * s0], axis=-1, keepdims=True))
    feats = jnp.concatenate(cols, axis=1)                    # (C_last, B)
    inv = 1.0 / float((H0 // df) * (W0 // df))
    o_ref[0] = (feats * inv).astype(o_ref.dtype)


# ---------------------------------------------------------------------------
# wrapper glue
# ---------------------------------------------------------------------------
def conv_encoder_forward(x_nchw, layer_params, activ_type="relu", pool_type="max",
                         *, batch_block=8, eps=1e-5, compute_dtype=jnp.bfloat16):
    N, Cin, H, W = x_nchw.shape
    L = len(layer_params)
    assert H % (2 ** L) == 0 and W % (2 ** L) == 0, "spatial dims must halve L times"
    B = min(batch_block, N)
    assert N % B == 0, "batch must be divisible by the batch block"
    S0 = H * W
    G = N // B

    # (N, Cin, H, W) -> (Cin, N*H*W): channels on sublanes, (sample,row,col) on lanes.
    x_enc = jnp.transpose(x_nchw, (1, 0, 2, 3)).reshape(Cin, N * S0)

    # per-lane row/col index maps (built host-side: no in-kernel int div/mod needed),
    # tiled across the batch block.
    ii = np.repeat(np.arange(H, dtype=np.int32), W)
    jj = np.tile(np.arange(W, dtype=np.int32), H)
    imap = jnp.asarray(np.tile(ii, B)[None, :])              # (1, B*S0)
    jmap = jnp.asarray(np.tile(jj, B)[None, :])

    operands = [x_enc, imap, jmap]
    in_specs = [
        pl.BlockSpec((Cin, B * S0), lambda nb: (0, nb)),
        pl.BlockSpec((1, B * S0), lambda nb: (0, 0)),
        pl.BlockSpec((1, B * S0), lambda nb: (0, 0)),
    ]

    cdt_size = jnp.dtype(compute_dtype).itemsize
    cin = Cin
    flops = 0
    transcendentals = 0
    param_bytes = 0
    for p in layer_params:
        cout = p["w"].shape[0]
        # fold BN(eval) scale into the conv weights; fold conv bias + BN shift.
        scale = p["gamma"] / jnp.sqrt(p["rvar"] + eps)                  # (cout,)
        w_scaled = p["w"] * scale[:, None, None, None]                  # (cout,cin,3,3)
        wt = jnp.transpose(w_scaled, (0, 2, 3, 1)).reshape(cout, 9 * cin)
        bias = ((p["b"] - p["rmean"]) * scale + p["beta"]).reshape(cout, 1)

        operands += [wt.astype(compute_dtype), bias.astype(jnp.float32)]
        # constant blocks (tiny): fetched once, revisited across the batch grid.
        in_specs += [pl.BlockSpec(wt.shape, lambda nb: (0, 0)),
                     pl.BlockSpec(bias.shape, lambda nb: (0, 0))]

        flops += 2 * 9 * cin * cout * N * S0        # dilated: each layer runs at S0
        if activ_type in ("gelu", "swish"):
            transcendentals += cout * N * S0
        param_bytes += wt.size * cdt_size + bias.size * 4
        cin = cout
    c_last = cin

    roll_np = _roll_is_numpy_semantics()
    kernel = functools.partial(
        fused_encoder_kernel, num_layers=L, pool=pool_type, activ=activ_type,
        H0=H, W0=W, compute_dtype=compute_dtype, roll_np=roll_np)

    cost = pl.CostEstimate(
        flops=int(flops),
        transcendentals=int(transcendentals),
        bytes_accessed=int(x_enc.size * x_enc.dtype.itemsize
                           + N * c_last * 4 + param_bytes + 2 * imap.size * 4))

    out3 = pl.pallas_call(
        kernel,
        out_shape=jax.ShapeDtypeStruct((G, c_last, B), x_nchw.dtype),
        grid=(G,),
        in_specs=in_specs,
        out_specs=pl.BlockSpec((1, c_last, B), lambda nb: (nb, 0, 0)),
        compiler_params=pltpu.CompilerParams(
            dimension_semantics=("parallel",),          # batch blocks are independent
            vmem_limit_bytes=32 * 1024 * 1024),
        cost_estimate=cost,
    )(*operands)

    # (G, C_last, B) -> (N, C_last)
    return jnp.transpose(out3, (0, 2, 1)).reshape(N, c_last)


# ---------------------------------------------------------------------------
# deterministic parameter init (mirrors shapes of ConvEncoder.__init__)
# ---------------------------------------------------------------------------
def init_conv_encoder_params(key, layer_num, hidden_ch, in_ch, out_ch):
    channels = [in_ch] + [hidden_ch] * (layer_num - 1) + [out_ch]
    params = []
    for i in range(layer_num):
        ci, co = channels[i], channels[i + 1]
        key, kw, kb, kg, kbeta, km, kv = jax.random.split(key, 7)
        fan_in = ci * 3 * 3
        bound = 1.0 / jnp.sqrt(jnp.float32(fan_in))
        params.append(dict(
            w=jax.random.uniform(kw, (co, ci, 3, 3), jnp.float32, -bound, bound),
            b=jax.random.uniform(kb, (co,), jnp.float32, -bound, bound),
            gamma=jax.random.uniform(kg, (co,), jnp.float32, 0.5, 1.5),
            beta=0.1 * jax.random.normal(kbeta, (co,), jnp.float32),
            rmean=0.1 * jax.random.normal(km, (co,), jnp.float32),
            rvar=jax.random.uniform(kv, (co,), jnp.float32, 0.5, 1.5),
        ))
    return params


# ---------------------------------------------------------------------------
# pure-JAX reference (for correctness check)
# ---------------------------------------------------------------------------
def conv_unit_ref(x_nhwc, p, activ_type, pool_type, eps=1e-5):
    w_hwio = jnp.transpose(p["w"], (2, 3, 1, 0))
    y = jax.lax.conv_general_dilated(
        x_nhwc, w_hwio, window_strides=(1, 1), padding="SAME",
        dimension_numbers=("NHWC", "HWIO", "NHWC")) + p["b"]
    scale = p["gamma"] / jnp.sqrt(p["rvar"] + eps)
    y = (y - p["rmean"]) * scale + p["beta"]
    y = _activate(y, activ_type)
    if pool_type == "max":
        y = jax.lax.reduce_window(y, -jnp.inf, jax.lax.max,
                                  (1, 2, 2, 1), (1, 2, 2, 1), "VALID")
    else:
        y = jax.lax.reduce_window(y, 0.0, jax.lax.add,
                                  (1, 2, 2, 1), (1, 2, 2, 1), "VALID") / 4.0
    return y


def conv_encoder_ref(x_nchw, layer_params, activ_type="relu", pool_type="max"):
    x = jnp.transpose(x_nchw, (0, 2, 3, 1))
    for p in layer_params:
        x = conv_unit_ref(x, p, activ_type, pool_type)
    return jnp.mean(x, axis=(1, 2))


# ---------------------------------------------------------------------------
if __name__ == "__main__":
    key = jax.random.PRNGKey(0)
    k_x, k_p = jax.random.split(key)

    # ConvEncoder(activ_type=..., pool_type=..., layer_num=3,
    #             hidden_channel_num=8, input_channel_num=1, out_channel_num=16)
    layer_num, hidden_ch, in_ch, out_ch = 3, 8, 1, 16
    N, H, W = 16, 16, 16                       # batch-blocked: 8 samples / grid step

    x = jax.random.normal(k_x, (N, in_ch, H, W), jnp.float32)   # NCHW, like PyTorch
    params = init_conv_encoder_params(k_p, layer_num, hidden_ch, in_ch, out_ch)

    # f32 MXU-operand path: tight check against the pure-JAX/XLA reference.
    for activ_type, pool_type in [("relu", "max"), ("relu", "avg"),
                                  ("leaky_relu", "max")]:
        out = jax.block_until_ready(
            conv_encoder_forward(x, params, activ_type, pool_type,
                                 batch_block=8, compute_dtype=jnp.float32))
        ref = jax.block_until_ready(
            conv_encoder_ref(x, params, activ_type, pool_type))
        assert out.shape == (N, out_ch), out.shape
        assert jnp.allclose(out, ref, atol=1e-3, rtol=1e-3), (
            f"{activ_type}/{pool_type} f32 max abs err "
            f"{jnp.max(jnp.abs(out - ref))}")

    # default bf16 MXU-operand path (f32 accumulation / elementwise): looser tolerance.
    out_bf16 = jax.block_until_ready(
        conv_encoder_forward(x, params, "relu", "max", batch_block=8))
    ref = jax.block_until_ready(conv_encoder_ref(x, params, "relu", "max"))
    assert jnp.allclose(out_bf16, ref, atol=5e-2, rtol=1e-1), (
        f"bf16 max abs err {jnp.max(jnp.abs(out_bf16 - ref))}")

    print("KERNEL_OK")
</pallas_src>

<mosaic_0001>
module attributes {stable_mosaic.version = 11 : i64} {
  func.func @k(%arg0: memref<8x128xf32, #tpu.memory_space<vmem>>, %arg1: memref<8x128xf32, #tpu.memory_space<vmem>>) attributes {dimension_semantics = [], scalar_prefetch = 0 : i64, scratch_operands = 0 : i64, tpu.core_type = #tpu.core_type<tc>} {
    %c0 = arith.constant 0 : index
    %c0_0 = arith.constant 0 : index
    %0 = vector.load %arg0[%c0, %c0_0] : memref<8x128xf32, #tpu.memory_space<vmem>>, vector<8x128xf32>
    %c1_i32 = arith.constant 1 : i32
    %1 = tpu.dynamic_rotate %0 by %c1_i32 dim 1 : vector<8x128xf32>, i32 -> vector<8x128xf32>
    %c0_1 = arith.constant 0 : index
    %c0_2 = arith.constant 0 : index
    %2 = vector.load %arg1[%c0_1, %c0_2] : memref<8x128xf32, #tpu.memory_space<vmem>>, vector<8x128xf32>
    tpu.vector_store %arg1[%c0_1, %c0_2], %1 {strides = array<i32>} : memref<8x128xf32, #tpu.memory_space<vmem>>, vector<8x128xf32>,
    return
  }
}

</mosaic_0001>

<llo_original>
// kernel: tpu_custom_call.1
$region0: #{tpu_custom_call.1}
  #allocation0 [shape = 'u32[]', space=smem, size = 0x4, offset = 0x4, fixed_abs, tag = 'smem constant byte address 0x4 - core index']
  #allocation1 [shape = 'u32[144,128]{1,0:T(1,128)}', space=vmem, size = 0x12000, scoped, tag = 'internal scratch']
  %s0 = inlined_call_operand.hbm [shape: f32[8,128], index: 0, kind: input, shape index: {}]
  %s1 = inlined_call_operand.hbm [shape: f32[8,128], index: 1, kind: output, shape index: {}]
  %s2 = sld [smem:[#allocation0]]
  $region18: #{tpu_custom_call.1} parent=0
    _
  %s4 = ssub.s32 1, %s2
  %s5 = scalar_select 0, %s4, %s2
  $region1: #{tpu_custom_call.1} parent=0
    #allocation2 [shape = 'u8[4096]{0}', space=vmem, size = 0x1000, scoped, tag = 'input window, operand 0, single buffered']
    #allocation3 [shape = 's32[1]{0}', space=sflag, size = 0x4, scoped, tag = 'scoped memory for tpu_custom_call.1']
    #allocation4 [shape = 's32[1]{0}', space=sflag, size = 0x4, scoped, tag = 'scoped memory for tpu_custom_call.1']
    #allocation5 [shape = 'u8[4096]{0}', space=vmem, size = 0x1000, scoped, tag = 'output window, operand 0, single buffered']
    %6 = vsyncpa [#allocation3], 0
    %7 = vsyncpa [#allocation4], 0
    // Predicated region
    $region2: #{tpu_custom_call.1} parent=1 // pred_check
      _
    $region3: #{tpu_custom_call.1} parent=1 // pred_check_branch
      %9 = sbr.rel (0) target = $region5
    $region4: #{tpu_custom_call.1} parent=1 // pred_region
      %s11 = ssub.s32 128, 128
      %12 = vsyncadd [#allocation3], %s11
      %s14 = sshll.u32 [#allocation2], 4
      %s15 = int_to_ptr.vmem [resolvable:$true] %s14
      %17 = dma.hbm_to_vmem [thread:$0]  %s0, 128, %s15, [#allocation3]
    $region5: #{tpu_custom_call.1} parent=1 // pred_fallthru
      _
    // Predicated region
    $region6: #{tpu_custom_call.1} parent=1 // pred_check
      _
    $region7: #{tpu_custom_call.1} parent=1 // pred_check_branch
      %19 = sbr.rel (0) target = $region9
    $region8: #{tpu_custom_call.1} parent=1 // pred_region
      %20 = dma.done [#allocation3], 128
    $region9: #{tpu_custom_call.1} parent=1 // pred_fallthru
      _
    %v21 = vld [vmem:[#allocation2] sm:$0xff]
    %22 = vrot.lane.b32.xlu0 %v21, 1
    %v23 = vpop.permute.xlu0 %22
    %24 = vst [vmem:[#allocation5] sm:$0xff] %v23
    // Predicated region
    $region10: #{tpu_custom_call.1} parent=1 // pred_check
      _
    $region11: #{tpu_custom_call.1} parent=1 // pred_check_branch
      %26 = sbr.rel (0) target = $region13
    $region12: #{tpu_custom_call.1} parent=1 // pred_region
      %s28 = ssub.s32 128, 128
      %29 = vsyncadd [#allocation4], %s28
      %s31 = sshll.u32 [#allocation5], 4
      %s32 = int_to_ptr.vmem [resolvable:$true] %s31
      %34 = dma.vmem_to_hbm [thread:$0]  %s32, 128, %s1, [#allocation4]
    $region13: #{tpu_custom_call.1} parent=1 // pred_fallthru
      _
    // Predicated region
    $region14: #{tpu_custom_call.1} parent=1 // pred_check
      _
    $region15: #{tpu_custom_call.1} parent=1 // pred_check_branch
      %36 = sbr.rel (0) target = $region17
    $region16: #{tpu_custom_call.1} parent=1 // pred_region
      %37 = dma.done [#allocation4], 128
    $region17: #{tpu_custom_call.1} parent=1 // pred_fallthru
      _
    %38 = vsyncpa [#allocation3], 1
    %39 = vsyncpa [#allocation4], 1

</llo_original>
